<compile_context>
chip_gen: v7x
topology: tpu7x:2x2x1
jax: 0.10.0
libtpu: 0.0.40
codegen_flags: <defaults>
</compile_context>

<pallas_src>
import jax
import jax.numpy as jnp
from jax.experimental import pallas as pl
from jax.experimental.pallas import tpu as pltpu

INPUT_SIZE = 1
N_STEPS = 24 * 2 - 1          # 47
IN_FEATURES = N_STEPS * INPUT_SIZE
HIDDEN1 = 32
OUTPUT_SIZE = 1

DEFAULT_TILE_B = 16384        # rows (lanes) per grid step; ~3 MiB of x per tile (f32)
LANE = 128                    # lane-dim granularity for the batch tile


def _round_up(n, m):
    return ((n + m - 1) // m) * m


def _cdiv(a, b):
    return (a + b - 1) // b


def mlp_kernel(xT_ref, w1_ref, b1_ref, w2_ref, b2_ref, o_ref):
    # xT: [47, T]   w1: [32, 47]   b1: [32, 1]   w2: [32, 1]   b2: SMEM (1, 1)
    # Layer 1 on the MXU, f32 accumulation; bias + ReLU epilogue in f32.
    h = jnp.dot(w1_ref[...], xT_ref[...], preferred_element_type=jnp.float32)
    h = jnp.maximum(h + b1_ref[...], 0.0)                     # [32, T]
    # Layer 2 has N=1 -> VPU multiply + sublane reduce (keeps the MXU free,
    # avoids a degenerate single-row systolic pass). Output is lane-dense.
    y = jnp.sum(h * w2_ref[...], axis=0, keepdims=True) + b2_ref[0, 0]   # [1, T]
    o_ref[...] = y.astype(o_ref.dtype)


def neural_network_forward(x, w1, b1, w2, b2, *, max_tile_b=DEFAULT_TILE_B):
    """Equivalent of NeuralNetwork.forward.

    x:  [B, 47]
    w1: [32, 47]  b1: [32]        (PyTorch Linear layout, [out, in])
    w2: [1, 32]   b2: [1]
    returns [B, 1]
    """
    B = x.shape[0]
    dtype = x.dtype

    # --- tile selection -------------------------------------------------
    max_tile_b = max(LANE, _round_up(max_tile_b, LANE))
    n_tiles = max(_cdiv(B, max_tile_b), 1)
    # v7x megacore: give the "parallel" batch axis >= 2 grid steps when the
    # batch is big enough for the split to be worthwhile.
    if n_tiles == 1 and B > 2 * LANE:
        n_tiles = 2
    # Balance the tail: pad each tile only up to the lane granularity instead
    # of padding B up to a full max-size tile.
    tile_b = _round_up(_cdiv(B, n_tiles), LANE)
    b_pad = tile_b * n_tiles

    # --- feature-major layout: x^T is [47, B], lane-dense over batch ----
    xT = x.T
    if b_pad != B:
        xT = jnp.pad(xT, ((0, 0), (0, b_pad - B)))

    b1_col = b1.reshape(HIDDEN1, 1).astype(jnp.float32)
    w2_col = w2.reshape(OUTPUT_SIZE, HIDDEN1).T.astype(jnp.float32)  # [32, 1]
    b2_s = b2.reshape(1, 1).astype(jnp.float32)                      # SMEM scalar

    grid = (n_tiles,)

    # --- VMEM budget (sublane-padded blocks, double-buffered x/out) -----
    itemsize = jnp.dtype(dtype).itemsize
    x_blk = 2 * _round_up(IN_FEATURES, 8) * tile_b * itemsize   # 47 -> 48 sublanes
    o_blk = 2 * 8 * tile_b * itemsize                           # 1  -> 8 sublanes
    h_blk = HIDDEN1 * tile_b * 4                                # f32 intermediate
    vmem_limit = int(min(max(2 * (x_blk + o_blk + h_blk) + (1 << 20),
                             32 * 1024 * 1024),
                         48 * 1024 * 1024))

    cost = pl.CostEstimate(
        flops=2 * b_pad * IN_FEATURES * HIDDEN1 + 2 * b_pad * HIDDEN1,
        transcendentals=0,
        bytes_accessed=(b_pad * IN_FEATURES + b_pad * OUTPUT_SIZE) * itemsize
        + (w1.size + b1.size + w2.size + b2.size) * 4,
    )

    out = pl.pallas_call(
        mlp_kernel,
        out_shape=jax.ShapeDtypeStruct((1, b_pad), dtype),
        grid=grid,
        in_specs=[
            # x^T: tiled over batch lanes, pipelined/double-buffered by Pallas
            pl.BlockSpec((IN_FEATURES, tile_b), lambda i: (0, i)),
            # weights / biases: constant index_map -> VMEM-resident across steps
            pl.BlockSpec((HIDDEN1, IN_FEATURES), lambda i: (0, 0)),
            pl.BlockSpec((HIDDEN1, 1), lambda i: (0, 0)),
            pl.BlockSpec((HIDDEN1, 1), lambda i: (0, 0)),
            # b2 scalar on the scalar path
            pl.BlockSpec(memory_space=pltpu.MemorySpace.SMEM),
        ],
        out_specs=pl.BlockSpec((1, tile_b), lambda i: (0, i)),
        compiler_params=pltpu.CompilerParams(
            dimension_semantics=("parallel",),   # shard batch tiles across TCs (v7x)
            vmem_limit_bytes=vmem_limit,
        ),
        cost_estimate=cost,
    )(xT, w1.astype(jnp.float32), b1_col, w2_col, b2_s)

    # [1, b_pad] -> [B, 1]; padded tail lanes are garbage and sliced off here.
    return out[0, :B].reshape(B, OUTPUT_SIZE)


def init_params(key):
    """Deterministic PyTorch-style (Kaiming-uniform-ish) init, PyTorch layouts."""
    k1, k2, k3, k4 = jax.random.split(key, 4)
    bound1 = 1.0 / (IN_FEATURES ** 0.5)
    bound2 = 1.0 / (HIDDEN1 ** 0.5)
    w1 = jax.random.uniform(k1, (HIDDEN1, IN_FEATURES), jnp.float32, -bound1, bound1)
    b1 = jax.random.uniform(k2, (HIDDEN1,), jnp.float32, -bound1, bound1)
    w2 = jax.random.uniform(k3, (OUTPUT_SIZE, HIDDEN1), jnp.float32, -bound2, bound2)
    b2 = jax.random.uniform(k4, (OUTPUT_SIZE,), jnp.float32, -bound2, bound2)
    return w1, b1, w2, b2


def _reference(x, w1, b1, w2, b2):
    return jnp.maximum(x @ w1.T + b1, 0.0) @ w2.T + b2


if __name__ == "__main__":
    key = jax.random.PRNGKey(0)
    kx, kx2, kp = jax.random.split(key, 3)
    w1, b1, w2, b2 = init_params(kp)

    # Small batch (single 128-lane tile, padded 8 -> 128).
    batch = 8
    x = jax.random.normal(kx, (batch, IN_FEATURES), dtype=jnp.float32)
    out = jax.block_until_ready(neural_network_forward(x, w1, b1, w2, b2))
    ref = _reference(x, w1, b1, w2, b2)
    assert out.shape == (batch, OUTPUT_SIZE)
    assert jnp.allclose(out, ref, atol=1e-5, rtol=1e-5)

    # Ragged batch with a forced small tile: exercises the multi-step grid,
    # megacore-style >=2 steps, and the tail-padding path
    # (B=300, max_tile=128 -> 3 tiles of 128, pad to 384).
    batch2 = 300
    x2 = jax.random.normal(kx2, (batch2, IN_FEATURES), dtype=jnp.float32)
    out2 = jax.block_until_ready(
        neural_network_forward(x2, w1, b1, w2, b2, max_tile_b=128))
    ref2 = _reference(x2, w1, b1, w2, b2)
    assert out2.shape == (batch2, OUTPUT_SIZE)
    assert jnp.allclose(out2, ref2, atol=1e-5, rtol=1e-5)

    print("KERNEL_OK")
</pallas_src>

<mosaic_0001>
module attributes {stable_mosaic.version = 11 : i64} {
  func.func @mlp_kernel(%arg0: i32, %arg1: memref<47x128xf32, #tpu.memory_space<vmem>>, %arg2: memref<32x47xf32, #tpu.memory_space<vmem>>, %arg3: memref<32x1xf32, #tpu.memory_space<vmem>>, %arg4: memref<32x1xf32, #tpu.memory_space<vmem>>, %arg5: memref<1x1xf32, #tpu.memory_space<smem>>, %arg6: memref<1x128xf32, #tpu.memory_space<vmem>>) attributes {dimension_semantics = [#tpu.dimension_semantics<parallel>], iteration_bounds = array<i64: 1>, scalar_prefetch = 0 : i64, scratch_operands = 0 : i64, tpu.core_type = #tpu.core_type<tc>, window_params = [{transform_indices = @transform_0, window_bounds = array<i64: 47, 128>}, {pipeline_mode = #tpu.pipeline_mode<synchronous>, transform_indices = @transform_1, window_bounds = array<i64: 32, 47>}, {pipeline_mode = #tpu.pipeline_mode<synchronous>, transform_indices = @transform_2, window_bounds = array<i64: 32, 1>}, {pipeline_mode = #tpu.pipeline_mode<synchronous>, transform_indices = @transform_3, window_bounds = array<i64: 32, 1>}, {transform_indices = @transform_4, window_bounds = array<i64: 1, 1>}, {transform_indices = @transform_5, window_bounds = array<i64: 1, 128>}]} {
    %c0 = arith.constant 0 : index
    %c0_0 = arith.constant 0 : index
    %0 = vector.load %arg2[%c0, %c0_0] : memref<32x47xf32, #tpu.memory_space<vmem>>, vector<32x47xf32>
    %c0_1 = arith.constant 0 : index
    %c0_2 = arith.constant 0 : index
    %1 = vector.load %arg1[%c0_1, %c0_2] : memref<47x128xf32, #tpu.memory_space<vmem>>, vector<47x128xf32>
    %cst = arith.constant dense<0.000000e+00> : vector<32x128xf32>
    %2 = tpu.matmul %0, %1, %cst {dimension_numbers = #tpu.dot_dimension_numbers<[1], [0], [0], [1], [0, 0, 1, 1], [], []>} : vector<32x47xf32>, vector<47x128xf32>, vector<32x128xf32> -> vector<32x128xf32>
    %c0_3 = arith.constant 0 : index
    %c0_4 = arith.constant 0 : index
    %3 = vector.load %arg3[%c0_3, %c0_4] : memref<32x1xf32, #tpu.memory_space<vmem>>, vector<32x1xf32>
    %4 = vector.broadcast %3 : vector<32x1xf32> to vector<32x128xf32>
    %5 = arith.addf %2, %4 : vector<32x128xf32>
    %cst_5 = arith.constant 0.000000e+00 : f32
    %6 = vector.broadcast %cst_5 : f32 to vector<32x128xf32>
    %7 = arith.maximumf %5, %6 : vector<32x128xf32>
    %c0_6 = arith.constant 0 : index
    %c0_7 = arith.constant 0 : index
    %8 = vector.load %arg4[%c0_6, %c0_7] : memref<32x1xf32, #tpu.memory_space<vmem>>, vector<32x1xf32>
    %9 = vector.broadcast %8 : vector<32x1xf32> to vector<32x128xf32>
    %10 = arith.mulf %7, %9 : vector<32x128xf32>
    %cst_8 = arith.constant dense<0.000000e+00> : vector<128xf32>
    %11 = vector.multi_reduction <add>, %10, %cst_8 [0] : vector<32x128xf32> to vector<128xf32>
    %12 = vector.shape_cast %11 : vector<128xf32> to vector<1x128xf32>
    %c0_9 = arith.constant 0 : index
    %c0_10 = arith.constant 0 : index
    %13 = memref.load %arg5[%c0_9, %c0_10] : memref<1x1xf32, #tpu.memory_space<smem>>
    %14 = vector.broadcast %13 : f32 to vector<1x128xf32>
    %15 = arith.addf %12, %14 : vector<1x128xf32>
    %c0_11 = arith.constant 0 : index
    %c0_12 = arith.constant 0 : index
    %16 = vector.load %arg6[%c0_11, %c0_12] : memref<1x128xf32, #tpu.memory_space<vmem>>, vector<1x128xf32>
    tpu.vector_store %arg6[%c0_11, %c0_12], %15 {strides = array<i32>} : memref<1x128xf32, #tpu.memory_space<vmem>>, vector<1x128xf32>,
    return
  }
  func.func @transform_0(%arg0: i32) -> (i32, i32) {
    %c0_i32 = arith.constant 0 : i32
    %c0_i32_0 = arith.constant 0 : i32
    return %c0_i32, %arg0 : i32, i32
  }
  func.func @transform_1(%arg0: i32) -> (i32, i32) {
    %c0_i32 = arith.constant 0 : i32
    %c0_i32_0 = arith.constant 0 : i32
    %c0_i32_1 = arith.constant 0 : i32
    return %c0_i32, %c0_i32_0 : i32, i32
  }
  func.func @transform_2(%arg0: i32) -> (i32, i32) {
    %c0_i32 = arith.constant 0 : i32
    %c0_i32_0 = arith.constant 0 : i32
    %c0_i32_1 = arith.constant 0 : i32
    return %c0_i32, %c0_i32_0 : i32, i32
  }
  func.func @transform_3(%arg0: i32) -> (i32, i32) {
    %c0_i32 = arith.constant 0 : i32
    %c0_i32_0 = arith.constant 0 : i32
    %c0_i32_1 = arith.constant 0 : i32
    return %c0_i32, %c0_i32_0 : i32, i32
  }
  func.func @transform_4(%arg0: i32) -> (i32, i32) {
    %c0_i32 = arith.constant 0 : i32
    %c0_i32_0 = arith.constant 0 : i32
    %c0_i32_1 = arith.constant 0 : i32
    return %c0_i32, %c0_i32_0 : i32, i32
  }
  func.func @transform_5(%arg0: i32) -> (i32, i32) {
    %c0_i32 = arith.constant 0 : i32
    %c0_i32_0 = arith.constant 0 : i32
    return %c0_i32, %arg0 : i32, i32
  }
}

</mosaic_0001>

<llo_original>
// kernel: tpu_custom_call.1
$region0: #{tpu_custom_call.1}
  #allocation0 [shape = 'u32[]', space=smem, size = 0x4, offset = 0x4, fixed_abs, tag = 'smem constant byte address 0x4 - core index']
  #allocation1 [shape = 'u32[144,128]{1,0:T(1,128)}', space=vmem, size = 0x12000, scoped, tag = 'internal scratch']
  #allocation2 [shape = 'f32[1,1]{1,0:T(1,128)S(6)}', space=smem, size = 0x200, scoped, tag = 'scoped memory for tpu_custom_call.1']
  %s0 = inlined_call_operand.vmem [shape: f32[47,128], index: 0, kind: input, shape index: {}]
  %s1 = inlined_call_operand.hbm [shape: f32[32,47], index: 1, kind: input, shape index: {}]
  %s2 = inlined_call_operand.vmem [shape: f32[32,1], index: 2, kind: input, shape index: {}]
  %s3 = inlined_call_operand.vmem [shape: f32[32,1], index: 3, kind: input, shape index: {}]
  %s4 = inlined_call_operand.<no memory space> [shape: f32[1,1], index: 4, kind: input, shape index: {}]
  %s5 = inlined_call_operand.hbm [shape: f32[1,128], index: 5, kind: output, shape index: {}]
  %s6 = sld [smem:[#allocation0]]
  $region34: #{tpu_custom_call.1} parent=0
    _
  %s8 = ssub.s32 1, %s6
  %s9 = scalar_select 0, %s8, %s6
  %10 = sst [smem:[#allocation2]] %s4
  $region1: #{tpu_custom_call.1} parent=0
    #allocation3 [shape = 'u8[16384]{0}', space=vmem, size = 0x4000, scoped, tag = 'input window, operand 1, single buffered']
    #allocation4 [shape = 's32[1]{0}', space=sflag, size = 0x4, scoped, tag = 'scoped memory for tpu_custom_call.1']
    #allocation5 [shape = 's32[1]{0}', space=sflag, size = 0x4, scoped, tag = 'scoped memory for tpu_custom_call.1']
    #allocation6 [shape = 'u8[512]{0}', space=vmem, size = 0x400, scoped, tag = 'output window, operand 0, single buffered']
    %11 = vsyncpa [#allocation4], 0
    %12 = vsyncpa [#allocation5], 0
    // Predicated region
    $region2: #{tpu_custom_call.1} parent=1 // pred_check
      _
    $region3: #{tpu_custom_call.1} parent=1 // pred_check_branch
      %14 = sbr.rel (0) target = $region5
    $region4: #{tpu_custom_call.1} parent=1 // pred_region
      _
    $region5: #{tpu_custom_call.1} parent=1 // pred_fallthru
      _
    // Predicated region
    $region6: #{tpu_custom_call.1} parent=1 // pred_check
      _
    $region7: #{tpu_custom_call.1} parent=1 // pred_check_branch
      %16 = sbr.rel (0) target = $region9
    $region8: #{tpu_custom_call.1} parent=1 // pred_region
      %s18 = ssub.s32 512, 512
      %19 = vsyncadd [#allocation4], %s18
      %s20 = sshll.u32 [#allocation3], 4
      %s21 = int_to_ptr.vmem [resolvable:$true] %s20
      %26 = dma.hbm_to_vmem [thread:$0]  %s1, 512, %s21, [#allocation4], 128, 128, 8
    $region9: #{tpu_custom_call.1} parent=1 // pred_fallthru
      _
    // Predicated region
    $region10: #{tpu_custom_call.1} parent=1 // pred_check
      _
    $region11: #{tpu_custom_call.1} parent=1 // pred_check_branch
      %28 = sbr.rel (0) target = $region13
    $region12: #{tpu_custom_call.1} parent=1 // pred_region
      _
    $region13: #{tpu_custom_call.1} parent=1 // pred_fallthru
      _
    // Predicated region
    $region14: #{tpu_custom_call.1} parent=1 // pred_check
      _
    $region15: #{tpu_custom_call.1} parent=1 // pred_check_branch
      %30 = sbr.rel (0) target = $region17
    $region16: #{tpu_custom_call.1} parent=1 // pred_region
      _
    $region17: #{tpu_custom_call.1} parent=1 // pred_fallthru
      _
    // Predicated region
    $region18: #{tpu_custom_call.1} parent=1 // pred_check
      _
    $region19: #{tpu_custom_call.1} parent=1 // pred_check_branch
      %32 = sbr.rel (0) target = $region21
    $region20: #{tpu_custom_call.1} parent=1 // pred_region
      _
    $region21: #{tpu_custom_call.1} parent=1 // pred_fallthru
      _
    // Predicated region
    $region22: #{tpu_custom_call.1} parent=1 // pred_check
      _
    $region23: #{tpu_custom_call.1} parent=1 // pred_check_branch
      %34 = sbr.rel (0) target = $region25
    $region24: #{tpu_custom_call.1} parent=1 // pred_region
      %35 = dma.done [#allocation4], 512
    $region25: #{tpu_custom_call.1} parent=1 // pred_fallthru
      _
    %v36 = vld [vmem:[#allocation3] sm:$0xff]
    %v37 = vld [vmem:[#allocation3 + $0x8] sm:$0xff]
    %v38 = vld [vmem:[#allocation3 + $0x10] sm:$0xff]
    %v39 = vld [vmem:[#allocation3 + $0x18] sm:$0xff]
    %v40 = vld [vmem:[%s0] sm:$0xff]
    %v41 = vld [vmem:[%s0 + $0x8] sm:$0xff]
    %v42 = vld [vmem:[%s0 + $0x10] sm:$0xff]
    %v43 = vld [vmem:[%s0 + $0x18] sm:$0xff]
    %v44 = vld [vmem:[%s0 + $0x20] sm:$0xff]
    %v45 = vld [vmem:[%s0 + $0x28] sm:$0x7f]
    %v46 = vld [vmem:[%s2] sm:$0xff]
    %v47 = vld [vmem:[%s2 + $0x8] sm:$0xff]
    %v48 = vld [vmem:[%s2 + $0x10] sm:$0xff]
    %v49 = vld [vmem:[%s2 + $0x18] sm:$0xff]
    %51 = vset.pattern.permute.xlu0 0
    %52 = vperm.xlu0 %51, %v46
    %v53 = vpop.permute.xlu0 %52
    %56 = vset.pattern.permute.xlu0 0
    %57 = vperm.xlu0 %56, %v47
    %v58 = vpop.permute.xlu0 %57
    %61 = vset.pattern.permute.xlu0 0
    %62 = vperm.xlu0 %61, %v48
    %v63 = vpop.permute.xlu0 %62
    %66 = vset.pattern.permute.xlu0 0
    %67 = vperm.xlu0 %66, %v49
    %v68 = vpop.permute.xlu0 %67
    %vm70 = vcmask 384000
    %v72 = vsel %vm70, %v36, 0
    %v75 = vsel %vm70, %v37, 0
    %v78 = vsel %vm70, %v38, 0
    %v81 = vsel %vm70, %v39, 0
    %vm83 = vcmask 1046528
    %v85 = vsel %vm83, %v45, 0
    %87 = vmatprep.subr.mxu0 0.0
    %88 = vmatpush1.msra.mxu0 %v40
    %89 = vmatprep.subr.mxu0 0.0
    %90 = vmatpush1.msra.mxu0 %v41
    %91 = vmatprep.subr.mxu0 0.0
    %92 = vmatpush1.msra.mxu0 %v42
    %93 = vmatprep.subr.mxu0 0.0
    %94 = vmatpush1.msra.mxu0 %v43
    %95 = vmatprep.subr.mxu0 0.0
    %96 = vmatpush1.msra.mxu0 %v44
    %97 = vmatprep.subr.mxu0 0.0
    %98 = vmatpush1.msra.mxu0 %v85
    %99 = vmatprep.subr.mxu0 0.0
    %100 = vmatpush1.msra.mxu0 0.0
    %101 = vmatprep.subr.mxu0 0.0
    %102 = vmatpush1.msra.mxu0 0.0
    %103 = vmatprep.subr.mxu0 0.0
    %104 = vmatpush1.msra.mxu0 0.0
    %105 = vmatprep.subr.mxu0 0.0
    %106 = vmatpush1.msra.mxu0 0.0
    %107 = vmatprep.subr.mxu0 0.0
    %108 = vmatpush1.msra.mxu0 0.0
    %109 = vmatprep.subr.mxu0 0.0
    %110 = vmatpush1.msra.mxu0 0.0
    %111 = vmatprep.subr.mxu0 0.0
    %112 = vmatpush1.msra.mxu0 0.0
    %113 = vmatprep.subr.mxu0 0.0
    %114 = vmatpush1.msra.mxu0 0.0
    %115 = vmatprep.subr.mxu0 0.0
    %116 = vmatpush1.msra.mxu0 0.0
    %117 = vmatprep.subr.mxu0 0.0
    %118 = vmatpush1.msra.mxu0 0.0
    %119 = vmatprep.subr.mxu0 0.0
    %120 = vmatpush1.msra.mxu0 0.0
    %121 = vmatprep.subr.mxu0 0.0
    %122 = vmatpush1.msra.mxu0 0.0
    %123 = vmatprep.subr.mxu0 0.0
    %124 = vmatpush1.msra.mxu0 0.0
    %125 = vmatprep.subr.mxu0 0.0
    %126 = vmatpush1.msra.mxu0 0.0
    %127 = vmatprep.subr.mxu0 0.0
    %128 = vmatpush1.msra.mxu0 0.0
    %129 = vmatprep.subr.mxu0 0.0
    %130 = vmatpush1.msra.mxu0 0.0
    %131 = vmatprep.subr.mxu0 0.0
    %132 = vmatpush1.msra.mxu0 0.0
    %133 = vmatprep.subr.mxu0 0.0
    %134 = vmatpush1.msra.mxu0 0.0
    %135 = vmatprep.subr.mxu0 0.0
    %136 = vmatpush1.msra.mxu0 0.0
    %137 = vmatprep.subr.mxu0 0.0
    %138 = vmatpush1.msra.mxu0 0.0
    %139 = vmatprep.subr.mxu0 0.0
    %140 = vmatpush1.msra.mxu0 0.0
    %141 = vmatprep.subr.mxu0 0.0
    %142 = vmatpush1.msra.mxu0 0.0
    %143 = vmatprep.subr.mxu0 0.0
    %144 = vmatpush1.msra.mxu0 0.0
    %145 = vmatprep.subr.mxu0 0.0
    %146 = vmatpush1.msra.mxu0 0.0
    %147 = vmatprep.subr.mxu0 0.0
    %148 = vmatpush1.msra.mxu0 0.0
    %149 = vmatprep.subr.mxu0 0.0
    %150 = vmatpush1.msra.mxu0 0.0
    %151 = vmatprep.mubr.f32.mxu0 0.0
    %152 = vmatmul.mubr.f32.gmra.mrb[0].mxu0 %v72
    %v153 = vpop.f32.mrb[0].mxu0
    %v154 = vadd.f32 %v53, %v153
    %v155 = vpop.f32.mrb[0].mxu0
    %156 = vmatprep.mubr.f32.mxu0 0.0
    %157 = vmatmul.mubr.f32.gmra.mrb[0].mxu0 %v75
    %v158 = vpop.f32.mrb[0].mxu0
    %v159 = vadd.f32 %v58, %v158
    %v160 = vpop.f32.mrb[0].mxu0
    %161 = vmatprep.mubr.f32.mxu0 0.0
    %162 = vmatmul.mubr.f32.gmra.mrb[0].mxu0 %v78
    %v163 = vpop.f32.mrb[0].mxu0
    %v164 = vadd.f32 %v63, %v163
    %v165 = vpop.f32.mrb[0].mxu0
    %166 = vmatprep.mubr.f32.mxu0 0.0
    %167 = vmatmul.mubr.f32.gmra.mrb[0].mxu0 %v81
    %v168 = vpop.f32.mrb[0].mxu0
    %v169 = vadd.f32 %v68, %v168
    %v170 = vpop.f32.mrb[0].mxu0
    %171 = vdwg.mxu0
    %v172 = vmax.f32 %v154, 0.0
    %v173 = vmax.f32 %v159, 0.0
    %v174 = vmax.f32 %v164, 0.0
    %v175 = vmax.f32 %v169, 0.0
    %v176 = vld [vmem:[%s3] sm:$0xff]
    %v177 = vld [vmem:[%s3 + $0x8] sm:$0xff]
    %v178 = vld [vmem:[%s3 + $0x10] sm:$0xff]
    %v179 = vld [vmem:[%s3 + $0x18] sm:$0xff]
    %181 = vset.pattern.permute.xlu0 0
    %182 = vperm.xlu0 %181, %v176
    %v183 = vpop.permute.xlu0 %182
    %186 = vset.pattern.permute.xlu0 0
    %187 = vperm.xlu0 %186, %v177
    %v188 = vpop.permute.xlu0 %187
    %191 = vset.pattern.permute.xlu0 0
    %192 = vperm.xlu0 %191, %v178
    %v193 = vpop.permute.xlu0 %192
    %196 = vset.pattern.permute.xlu0 0
    %197 = vperm.xlu0 %196, %v179
    %v198 = vpop.permute.xlu0 %197
    %v200 = vmul.f32 %v172, %v183
    %v201 = vmul.f32 %v173, %v188
    %v202 = vmul.f32 %v174, %v193
    %v203 = vmul.f32 %v175, %v198
    %v204 = vadd.f32 %v200, %v201
    %v205 = vadd.f32 %v204, %v202
    %v206 = vadd.f32 %v205, %v203
    %v207 = vrot.slane %v206, 4
    %v208 = vadd.f32 %v206, %v207
    %v209 = vrot.slane %v208, 2
    %v210 = vadd.f32 %v208, %v209
    %v211 = vrot.slane %v210, 1
    %v212 = vadd.f32 %v210, %v211
    %s213 = sld [smem:[#allocation2]]
    %v214 = vstv %s213
    %v215 = vadd.f32 %v212, %v214
    %216 = vst [vmem:[#allocation6] sm:$0x1] %v215
    // Predicated region
    $region26: #{tpu_custom_call.1} parent=1 // pred_check
      _
    $region27: #{tpu_custom_call.1} parent=1 // pred_check_branch
      %218 = sbr.rel (0) target = $region29
    $region28: #{tpu_custom_call.1} parent=1 // pred_region
      %s220 = ssub.s32 16, 16
      %221 = vsyncadd [#allocation5], %s220
      %s223 = sshll.u32 [#allocation6], 4
      %s224 = int_to_ptr.vmem [resolvable:$true] %s223
      %226 = dma.vmem_to_hbm [thread:$0]  %s224, 16, %s5, [#allocation5]
    $region29: #{tpu_custom_call.1} parent=1 // pred_fallthru
      _
    // Predicated region
    $region30: #{tpu_custom_call.1} parent=1 // pred_check
      _
    $region31: #{tpu_custom_call.1} parent=1 // pred_check_branch
      %228 = sbr.rel (0) target = $region33
    $region32: #{tpu_custom_call.1} parent=1 // pred_region
      %229 = dma.done [#allocation5], 16
    $region33: #{tpu_custom_call.1} parent=1 // pred_fallthru
      _
    %230 = vsyncpa [#allocation4], 1
    %231 = vsyncpa [#allocation5], 1

</llo_original>
